<compile_context>
chip_gen: v6e
topology: v6e:2x2x1
jax: 0.10.0
libtpu: 0.0.40
codegen_flags: <defaults>
</compile_context>

<pallas_src>
import jax
import jax.numpy as jnp
import numpy as np
from jax.experimental import pallas as pl
from jax.experimental.pallas import tpu as pltpu


# ------------------------------ Pallas kernels ------------------------------ #

def se_gate_kernel(xs_ref, wf_ref, w2t_ref, gate_ref):
    # xs_ref:   [B, Ci*Hs*Ws]   flattened feat_small (whole batch)
    # wf_ref:   [Ci*Hs*Ws, Co]  pool-folded 4x4 conv weight
    # w2t_ref:  [Co, Co]        1x1 conv weight, transposed ([c, o])
    # gate_ref: [B, Co]         per-(batch, channel) sigmoid gate
    z1 = jnp.dot(xs_ref[...], wf_ref[...], preferred_element_type=jnp.float32)
    s = z1 * jax.nn.sigmoid(z1)                                  # Swish
    z2 = jnp.dot(s, w2t_ref[...], preferred_element_type=jnp.float32)
    gate_ref[...] = jax.nn.sigmoid(z2)


def se_scale_kernel(gate_ref, big_ref, out_ref):
    # gate_ref: [Bt, Co, 1]      gate column for this batch tile
    # big_ref:  [Bt, Co, Hb*Wb]  lane-dense feat_big tile
    # out_ref:  [Bt, Co, Hb*Wb]
    # Pure lane-broadcast multiply in the output dtype (bf16 stays bf16).
    out_ref[...] = big_ref[...] * gate_ref[...].astype(big_ref.dtype)


# ------------------------------- glue / wrapper ----------------------------- #

def adaptive_pool_matrix(in_size, out_size):
    """P[h, i] = 1/len(bin_i) if row h belongs to adaptive-avg-pool bin i."""
    P = np.zeros((in_size, out_size), np.float32)
    for i in range(out_size):
        s = (i * in_size) // out_size
        e = ((i + 1) * in_size + out_size - 1) // out_size  # ceil
        P[s:e, i] = 1.0 / (e - s)
    return P


def spectral_normalize(w, iters=50):
    """Divide conv weight by its spectral norm (converged power iteration)."""
    mat = w.reshape(w.shape[0], -1)
    v = jnp.ones((mat.shape[1],), mat.dtype) / jnp.sqrt(float(mat.shape[1]))
    u = mat @ v
    for _ in range(iters):
        u = mat @ v
        u = u / (jnp.linalg.norm(u) + 1e-12)
        v = mat.T @ u
        v = v / (jnp.linalg.norm(v) + 1e-12)
    sigma = u @ (mat @ v)
    return w / sigma


def _vmem_limits():
    """Per-generation scoped-VMEM limit and working-block budget."""
    try:
        cap = int(pltpu.get_tpu_info().vmem_capacity_bytes)   # 64 MiB v7x, 128 MiB v5e/v6e
    except Exception:
        cap = 64 * 1024 * 1024                                # conservative (v7x)
    limit = cap // 2                                          # 32 MiB v7x, 64 MiB v5e/v6e
    budget = (3 * limit) // 4                                 # headroom for gate/other bufs
    return limit, budget


def _choose_batch_tile(B, Co, HWb, dtype_bytes, tile_budget_bytes):
    """Largest Bt s.t. double-buffered (in + out) feat_big tiles fit the budget,
    while keeping >=2 grid steps (v7x megacore) and Bt | B."""
    per_elem = Co * HWb * dtype_bytes
    bt = max(1, int(tile_budget_bytes // (4 * per_elem)))     # 2 bufs x (in + out)
    if B >= 2:
        bt = min(bt, B // 2)
    bt = max(1, min(bt, B))
    while B % bt:
        bt -= 1
    return bt


def se_block_forward(feat_small, feat_big, w1, w2):
    B, Ci, Hs, Ws = feat_small.shape
    Bb, Co, Hb, Wb = feat_big.shape
    assert Bb == B and w1.shape == (Co, Ci, 4, 4) and w2.shape == (Co, Co, 1, 1)
    P = Hs * Ws
    HWb = Hb * Wb

    # Fold AdaptiveAvgPool2d(4) into the 4x4 conv weight (tiny, done in XLA).
    K = jnp.asarray(np.kron(adaptive_pool_matrix(Hs, 4),
                            adaptive_pool_matrix(Ws, 4)))            # [P, 16]
    w1r = w1.reshape(Co, Ci, 16).astype(jnp.float32)
    wfold = jnp.einsum('ocq,pq->ocp', w1r, K)                        # [Co, Ci, P]
    wfT = wfold.reshape(Co, Ci * P).T                                # [Ci*P, Co]
    w2t = w2[:, :, 0, 0].astype(jnp.float32).T                       # [Co, Co]

    xs = feat_small.reshape(B, Ci * P).astype(jnp.float32)           # lane-dense
    fb = feat_big.reshape(B, Co, HWb)                                # lane-dense

    vmem_limit, tile_budget = _vmem_limits()
    Bt = _choose_batch_tile(B, Co, HWb, feat_big.dtype.itemsize, tile_budget)

    # 1) Whole-batch gate: one matmul chain, single step (all arrays are tiny).
    gate = pl.pallas_call(
        se_gate_kernel,
        out_shape=jax.ShapeDtypeStruct((B, Co), jnp.float32),
    )(xs, wfT, w2t)
    gate3 = gate.reshape(B, Co, 1)                                   # [B, Co, 1]

    # 2) Batch-tiled, bandwidth-bound broadcast multiply.
    out2 = pl.pallas_call(
        se_scale_kernel,
        out_shape=jax.ShapeDtypeStruct((B, Co, HWb), feat_big.dtype),
        grid=(B // Bt,),
        in_specs=[
            pl.BlockSpec((Bt, Co, 1), lambda b: (b, 0, 0)),
            pl.BlockSpec((Bt, Co, HWb), lambda b: (b, 0, 0)),
        ],
        out_specs=pl.BlockSpec((Bt, Co, HWb), lambda b: (b, 0, 0)),
        compiler_params=pltpu.CompilerParams(
            dimension_semantics=("parallel",),
            vmem_limit_bytes=vmem_limit,
        ),
    )(gate3, fb)
    return out2.reshape(B, Co, Hb, Wb)


if __name__ == "__main__":
    key = jax.random.PRNGKey(0)
    k1, k2, k3, k4 = jax.random.split(key, 4)

    B, C_in, C_out = 2, 4, 8
    Hs = Ws = 16
    Hb = Wb = 32

    feat_small = jax.random.normal(k1, (B, C_in, Hs, Ws), jnp.float32)
    feat_big = jax.random.normal(k2, (B, C_out, Hb, Wb), jnp.float32)

    # Deterministic synthetic weights (conv1: 4x4, conv2: 1x1, both bias=False),
    # spectrally normalized as in spectral_norm(nn.Conv2d(...)).
    w1 = spectral_normalize(0.1 * jax.random.normal(k3, (C_out, C_in, 4, 4), jnp.float32))
    w2 = spectral_normalize(0.1 * jax.random.normal(k4, (C_out, C_out, 1, 1), jnp.float32))

    out = jax.block_until_ready(se_block_forward(feat_small, feat_big, w1, w2))

    # Pure-JAX reference (explicit pool -> conv -> swish -> conv -> sigmoid).
    pooled = feat_small.reshape(B, C_in, 4, Hs // 4, 4, Ws // 4).mean(axis=(3, 5))
    z1 = jnp.einsum("bcij,ocij->bo", pooled, w1)
    s = z1 * jax.nn.sigmoid(z1)
    z2 = jnp.einsum("bc,oc->bo", s, w2[:, :, 0, 0])
    ref = feat_big * jax.nn.sigmoid(z2)[:, :, None, None]

    err = float(jnp.max(jnp.abs(out - ref)))
    assert jnp.allclose(out, ref, rtol=1e-4, atol=1e-5), f"max abs err = {err}"
    print("KERNEL_OK")
</pallas_src>

<mosaic_0001>
module attributes {stable_mosaic.version = 11 : i64} {
  func.func @se_gate_kernel(%arg0: memref<2x1024xf32, #tpu.memory_space<vmem>>, %arg1: memref<1024x8xf32, #tpu.memory_space<vmem>>, %arg2: memref<8x8xf32, #tpu.memory_space<vmem>>, %arg3: memref<2x8xf32, #tpu.memory_space<vmem>>) attributes {dimension_semantics = [], scalar_prefetch = 0 : i64, scratch_operands = 0 : i64, tpu.core_type = #tpu.core_type<tc>} {
    %c0 = arith.constant 0 : index
    %c0_0 = arith.constant 0 : index
    %0 = vector.load %arg0[%c0, %c0_0] : memref<2x1024xf32, #tpu.memory_space<vmem>>, vector<2x1024xf32>
    %c0_1 = arith.constant 0 : index
    %c0_2 = arith.constant 0 : index
    %1 = vector.load %arg1[%c0_1, %c0_2] : memref<1024x8xf32, #tpu.memory_space<vmem>>, vector<1024x8xf32>
    %cst = arith.constant dense<0.000000e+00> : vector<2x8xf32>
    %2 = tpu.matmul %0, %1, %cst {dimension_numbers = #tpu.dot_dimension_numbers<[1], [0], [0], [1], [0, 0, 1, 1], [], []>} : vector<2x1024xf32>, vector<1024x8xf32>, vector<2x8xf32> -> vector<2x8xf32>
    %3 = arith.negf %2 : vector<2x8xf32>
    %4 = math.exp %3 : vector<2x8xf32>
    %cst_3 = arith.constant 1.000000e+00 : f32
    %5 = vector.broadcast %cst_3 : f32 to vector<2x8xf32>
    %6 = arith.addf %5, %4 : vector<2x8xf32>
    %7 = arith.divf %5, %6 : vector<2x8xf32>
    %8 = arith.mulf %2, %7 : vector<2x8xf32>
    %c0_4 = arith.constant 0 : index
    %c0_5 = arith.constant 0 : index
    %9 = vector.load %arg2[%c0_4, %c0_5] : memref<8x8xf32, #tpu.memory_space<vmem>>, vector<8x8xf32>
    %cst_6 = arith.constant dense<0.000000e+00> : vector<2x8xf32>
    %10 = tpu.matmul %8, %9, %cst_6 {dimension_numbers = #tpu.dot_dimension_numbers<[1], [0], [0], [1], [0, 0, 1, 1], [], []>} : vector<2x8xf32>, vector<8x8xf32>, vector<2x8xf32> -> vector<2x8xf32>
    %11 = arith.negf %10 : vector<2x8xf32>
    %12 = math.exp %11 : vector<2x8xf32>
    %cst_7 = arith.constant 1.000000e+00 : f32
    %13 = vector.broadcast %cst_7 : f32 to vector<2x8xf32>
    %14 = arith.addf %13, %12 : vector<2x8xf32>
    %15 = arith.divf %13, %14 : vector<2x8xf32>
    %c0_8 = arith.constant 0 : index
    %c0_9 = arith.constant 0 : index
    %16 = vector.load %arg3[%c0_8, %c0_9] : memref<2x8xf32, #tpu.memory_space<vmem>>, vector<2x8xf32>
    tpu.vector_store %arg3[%c0_8, %c0_9], %15 {strides = array<i32>} : memref<2x8xf32, #tpu.memory_space<vmem>>, vector<2x8xf32>,
    return
  }
}

</mosaic_0001>

<llo_original>
// kernel: tpu_custom_call.1
$region0: #{tpu_custom_call.1}
  #allocation0 [shape = 'u32[]', space=smem, size = 0x4, offset = 0x4, fixed_abs, tag = 'smem constant byte address 0x4 - core index']
  #allocation1 [shape = 'u32[144,128]{1,0:T(1,128)}', space=vmem, size = 0x12000, scoped, tag = 'internal scratch']
  %s0 = inlined_call_operand.vmem [shape: f32[2,1024], index: 0, kind: input, shape index: {}]
  %s1 = inlined_call_operand.vmem [shape: f32[1024,8], index: 1, kind: input, shape index: {}]
  %s2 = inlined_call_operand.vmem [shape: f32[8,8], index: 2, kind: input, shape index: {}]
  %s3 = inlined_call_operand.hbm [shape: f32[2,8], index: 3, kind: output, shape index: {}]
  %s4 = sld [smem:[#allocation0]]
  $region22: #{tpu_custom_call.1} parent=0
    _
  %s6 = ssub.s32 1, %s4
  %s7 = scalar_select 0, %s6, %s4
  $region1: #{tpu_custom_call.1} parent=0
    #allocation2 [shape = 'u8[1024]{0}', space=vmem, size = 0x400, scoped, tag = 'output window, operand 0, single buffered']
    #allocation3 [shape = 's32[1]{0}', space=sflag, size = 0x4, scoped, tag = 'scoped memory for tpu_custom_call.1']
    %8 = vsyncpa [#allocation3], 0
    // Predicated region
    $region2: #{tpu_custom_call.1} parent=1 // pred_check
      _
    $region3: #{tpu_custom_call.1} parent=1 // pred_check_branch
      %10 = sbr.rel (0) target = $region5
    $region4: #{tpu_custom_call.1} parent=1 // pred_region
      _
    $region5: #{tpu_custom_call.1} parent=1 // pred_fallthru
      _
    // Predicated region
    $region6: #{tpu_custom_call.1} parent=1 // pred_check
      _
    $region7: #{tpu_custom_call.1} parent=1 // pred_check_branch
      %12 = sbr.rel (0) target = $region9
    $region8: #{tpu_custom_call.1} parent=1 // pred_region
      _
    $region9: #{tpu_custom_call.1} parent=1 // pred_fallthru
      _
    // Predicated region
    $region10: #{tpu_custom_call.1} parent=1 // pred_check
      _
    $region11: #{tpu_custom_call.1} parent=1 // pred_check_branch
      %14 = sbr.rel (0) target = $region13
    $region12: #{tpu_custom_call.1} parent=1 // pred_region
      _
    $region13: #{tpu_custom_call.1} parent=1 // pred_fallthru
      _
    %v15 = vld [vmem:[%s0] sm:$0xff]
    %v16 = vld [vmem:[%s0 + $0x8] sm:$0xff]
    %v17 = vld [vmem:[%s1] sm:$0xff]
    %v18 = vld [vmem:[%s1 + $0x8] sm:$0xff]
    %v19 = vld [vmem:[%s1 + $0x10] sm:$0xff]
    %v20 = vld [vmem:[%s1 + $0x18] sm:$0xff]
    %v21 = vld [vmem:[%s1 + $0x20] sm:$0xff]
    %v22 = vld [vmem:[%s1 + $0x28] sm:$0xff]
    %v23 = vld [vmem:[%s1 + $0x30] sm:$0xff]
    %v24 = vld [vmem:[%s1 + $0x38] sm:$0xff]
    %v25 = vld [vmem:[%s1 + $0x40] sm:$0xff]
    %v26 = vld [vmem:[%s1 + $0x48] sm:$0xff]
    %v27 = vld [vmem:[%s1 + $0x50] sm:$0xff]
    %v28 = vld [vmem:[%s1 + $0x58] sm:$0xff]
    %v29 = vld [vmem:[%s1 + $0x60] sm:$0xff]
    %v30 = vld [vmem:[%s1 + $0x68] sm:$0xff]
    %v31 = vld [vmem:[%s1 + $0x70] sm:$0xff]
    %v32 = vld [vmem:[%s1 + $0x78] sm:$0xff]
    %v33 = vld [vmem:[%s1 + $0x80] sm:$0xff]
    %v34 = vld [vmem:[%s1 + $0x88] sm:$0xff]
    %v35 = vld [vmem:[%s1 + $0x90] sm:$0xff]
    %v36 = vld [vmem:[%s1 + $0x98] sm:$0xff]
    %v37 = vld [vmem:[%s1 + $0xa0] sm:$0xff]
    %v38 = vld [vmem:[%s1 + $0xa8] sm:$0xff]
    %v39 = vld [vmem:[%s1 + $0xb0] sm:$0xff]
    %v40 = vld [vmem:[%s1 + $0xb8] sm:$0xff]
    %v41 = vld [vmem:[%s1 + $0xc0] sm:$0xff]
    %v42 = vld [vmem:[%s1 + $0xc8] sm:$0xff]
    %v43 = vld [vmem:[%s1 + $0xd0] sm:$0xff]
    %v44 = vld [vmem:[%s1 + $0xd8] sm:$0xff]
    %v45 = vld [vmem:[%s1 + $0xe0] sm:$0xff]
    %v46 = vld [vmem:[%s1 + $0xe8] sm:$0xff]
    %v47 = vld [vmem:[%s1 + $0xf0] sm:$0xff]
    %v48 = vld [vmem:[%s1 + $0xf8] sm:$0xff]
    %v49 = vld [vmem:[%s1 + $0x100] sm:$0xff]
    %v50 = vld [vmem:[%s1 + $0x108] sm:$0xff]
    %v51 = vld [vmem:[%s1 + $0x110] sm:$0xff]
    %v52 = vld [vmem:[%s1 + $0x118] sm:$0xff]
    %v53 = vld [vmem:[%s1 + $0x120] sm:$0xff]
    %v54 = vld [vmem:[%s1 + $0x128] sm:$0xff]
    %v55 = vld [vmem:[%s1 + $0x130] sm:$0xff]
    %v56 = vld [vmem:[%s1 + $0x138] sm:$0xff]
    %v57 = vld [vmem:[%s1 + $0x140] sm:$0xff]
    %v58 = vld [vmem:[%s1 + $0x148] sm:$0xff]
    %v59 = vld [vmem:[%s1 + $0x150] sm:$0xff]
    %v60 = vld [vmem:[%s1 + $0x158] sm:$0xff]
    %v61 = vld [vmem:[%s1 + $0x160] sm:$0xff]
    %v62 = vld [vmem:[%s1 + $0x168] sm:$0xff]
    %v63 = vld [vmem:[%s1 + $0x170] sm:$0xff]
    %v64 = vld [vmem:[%s1 + $0x178] sm:$0xff]
    %v65 = vld [vmem:[%s1 + $0x180] sm:$0xff]
    %v66 = vld [vmem:[%s1 + $0x188] sm:$0xff]
    %v67 = vld [vmem:[%s1 + $0x190] sm:$0xff]
    %v68 = vld [vmem:[%s1 + $0x198] sm:$0xff]
    %v69 = vld [vmem:[%s1 + $0x1a0] sm:$0xff]
    %v70 = vld [vmem:[%s1 + $0x1a8] sm:$0xff]
    %v71 = vld [vmem:[%s1 + $0x1b0] sm:$0xff]
    %v72 = vld [vmem:[%s1 + $0x1b8] sm:$0xff]
    %v73 = vld [vmem:[%s1 + $0x1c0] sm:$0xff]
    %v74 = vld [vmem:[%s1 + $0x1c8] sm:$0xff]
    %v75 = vld [vmem:[%s1 + $0x1d0] sm:$0xff]
    %v76 = vld [vmem:[%s1 + $0x1d8] sm:$0xff]
    %v77 = vld [vmem:[%s1 + $0x1e0] sm:$0xff]
    %v78 = vld [vmem:[%s1 + $0x1e8] sm:$0xff]
    %v79 = vld [vmem:[%s1 + $0x1f0] sm:$0xff]
    %v80 = vld [vmem:[%s1 + $0x1f8] sm:$0xff]
    %v81 = vld [vmem:[%s1 + $0x200] sm:$0xff]
    %v82 = vld [vmem:[%s1 + $0x208] sm:$0xff]
    %v83 = vld [vmem:[%s1 + $0x210] sm:$0xff]
    %v84 = vld [vmem:[%s1 + $0x218] sm:$0xff]
    %v85 = vld [vmem:[%s1 + $0x220] sm:$0xff]
    %v86 = vld [vmem:[%s1 + $0x228] sm:$0xff]
    %v87 = vld [vmem:[%s1 + $0x230] sm:$0xff]
    %v88 = vld [vmem:[%s1 + $0x238] sm:$0xff]
    %v89 = vld [vmem:[%s1 + $0x240] sm:$0xff]
    %v90 = vld [vmem:[%s1 + $0x248] sm:$0xff]
    %v91 = vld [vmem:[%s1 + $0x250] sm:$0xff]
    %v92 = vld [vmem:[%s1 + $0x258] sm:$0xff]
    %v93 = vld [vmem:[%s1 + $0x260] sm:$0xff]
    %v94 = vld [vmem:[%s1 + $0x268] sm:$0xff]
    %v95 = vld [vmem:[%s1 + $0x270] sm:$0xff]
    %v96 = vld [vmem:[%s1 + $0x278] sm:$0xff]
    %v97 = vld [vmem:[%s1 + $0x280] sm:$0xff]
    %v98 = vld [vmem:[%s1 + $0x288] sm:$0xff]
    %v99 = vld [vmem:[%s1 + $0x290] sm:$0xff]
    %v100 = vld [vmem:[%s1 + $0x298] sm:$0xff]
    %v101 = vld [vmem:[%s1 + $0x2a0] sm:$0xff]
    %v102 = vld [vmem:[%s1 + $0x2a8] sm:$0xff]
    %v103 = vld [vmem:[%s1 + $0x2b0] sm:$0xff]
    %v104 = vld [vmem:[%s1 + $0x2b8] sm:$0xff]
    %v105 = vld [vmem:[%s1 + $0x2c0] sm:$0xff]
    %v106 = vld [vmem:[%s1 + $0x2c8] sm:$0xff]
    %v107 = vld [vmem:[%s1 + $0x2d0] sm:$0xff]
    %v108 = vld [vmem:[%s1 + $0x2d8] sm:$0xff]
    %v109 = vld [vmem:[%s1 + $0x2e0] sm:$0xff]
    %v110 = vld [vmem:[%s1 + $0x2e8] sm:$0xff]
    %v111 = vld [vmem:[%s1 + $0x2f0] sm:$0xff]
    %v112 = vld [vmem:[%s1 + $0x2f8] sm:$0xff]
    %v113 = vld [vmem:[%s1 + $0x300] sm:$0xff]
    %v114 = vld [vmem:[%s1 + $0x308] sm:$0xff]
    %v115 = vld [vmem:[%s1 + $0x310] sm:$0xff]
    %v116 = vld [vmem:[%s1 + $0x318] sm:$0xff]
    %v117 = vld [vmem:[%s1 + $0x320] sm:$0xff]
    %v118 = vld [vmem:[%s1 + $0x328] sm:$0xff]
    %v119 = vld [vmem:[%s1 + $0x330] sm:$0xff]
    %v120 = vld [vmem:[%s1 + $0x338] sm:$0xff]
    %v121 = vld [vmem:[%s1 + $0x340] sm:$0xff]
    %v122 = vld [vmem:[%s1 + $0x348] sm:$0xff]
    %v123 = vld [vmem:[%s1 + $0x350] sm:$0xff]
    %v124 = vld [vmem:[%s1 + $0x358] sm:$0xff]
    %v125 = vld [vmem:[%s1 + $0x360] sm:$0xff]
    %v126 = vld [vmem:[%s1 + $0x368] sm:$0xff]
    %v127 = vld [vmem:[%s1 + $0x370] sm:$0xff]
    %v128 = vld [vmem:[%s1 + $0x378] sm:$0xff]
    %v129 = vld [vmem:[%s1 + $0x380] sm:$0xff]
    %v130 = vld [vmem:[%s1 + $0x388] sm:$0xff]
    %v131 = vld [vmem:[%s1 + $0x390] sm:$0xff]
    %v132 = vld [vmem:[%s1 + $0x398] sm:$0xff]
    %v133 = vld [vmem:[%s1 + $0x3a0] sm:$0xff]
    %v134 = vld [vmem:[%s1 + $0x3a8] sm:$0xff]
    %v135 = vld [vmem:[%s1 + $0x3b0] sm:$0xff]
    %v136 = vld [vmem:[%s1 + $0x3b8] sm:$0xff]
    %v137 = vld [vmem:[%s1 + $0x3c0] sm:$0xff]
    %v138 = vld [vmem:[%s1 + $0x3c8] sm:$0xff]
    %v139 = vld [vmem:[%s1 + $0x3d0] sm:$0xff]
    %v140 = vld [vmem:[%s1 + $0x3d8] sm:$0xff]
    %v141 = vld [vmem:[%s1 + $0x3e0] sm:$0xff]
    %v142 = vld [vmem:[%s1 + $0x3e8] sm:$0xff]
    %v143 = vld [vmem:[%s1 + $0x3f0] sm:$0xff]
    %v144 = vld [vmem:[%s1 + $0x3f8] sm:$0xff]
    %v147 = vcombine.high %v15, %v15
    %v149 = vunpack.c.l.s4 1983009808
    %v150 = vunpack.c.0.s8 %v149
    %v151 = vlaneseq
    %v152 = vshrl.u32 %v151, 7
    %v153 = vsub.s32 %v150, %v152
    %v154 = vrot.slane %v15, %v153
    %v156 = vunpack.c.l.s4 1983009808
    %v157 = vunpack.c.0.s8 %v156
    %v158 = vlaneseq
    %v159 = vshrl.u32 %v158, 7
    %v160 = vsub.s32 %v157, %v159
    %v161 = vrot.slane %v147, %v160
    %v162 = vcombine.high %v154, %v154
    %v163 = vcombine.high %v161, %v161
    %v164 = vcombine.high %v16, %v16
    %v166 = vunpack.c.l.s4 1983009808
    %v167 = vunpack.c.0.s8 %v166
    %v168 = vlaneseq
    %v169 = vshrl.u32 %v168, 7
    %v170 = vsub.s32 %v167, %v169
    %v171 = vrot.slane %v16, %v170
    %v173 = vunpack.c.l.s4 1983009808
    %v174 = vunpack.c.0.s8 %v173
    %v175 = vlaneseq
    %v176 = vshrl.u32 %v175, 7
    %v177 = vsub.s32 %v174, %v176
    %v178 = vrot.slane %v164, %v177
    %v179 = vcombine.high %v171, %v171
    %v180 = vcombine.high %v178, %v178
    %189 = vmatprep.subr.mxu0 0.0
    %190 = vmatpush1.msra.mxu0 %v32
    %191 = vmatprep.subr.mxu0 0.0
    %192 = vmatpush1.msra.mxu0 %v31
    %193 = vmatprep.subr.mxu0 0.0
    %194 = vmatpush1.msra.mxu0 %v30
    %195 = vmatprep.subr.mxu0 0.0
    %196 = vmatpush1.msra.mxu0 %v29
    %197 = vmatprep.subr.mxu0 0.0
    %198 = vmatpush1.msra.mxu0 %v28
    %199 = vmatprep.subr.mxu0 0.0
    %200 = vmatpush1.msra.mxu0 %v27
    %201 = vmatprep.subr.mxu0 0.0
    %202 = vmatpush1.msra.mxu0 %v26
    %203 = vmatprep.subr.mxu0 0.0
    %204 = vmatpush1.msra.mxu0 %v25
    %205 = vmatprep.subr.mxu0 0.0
    %206 = vmatpush1.msra.mxu0 %v24
    %207 = vmatprep.subr.mxu0 0.0
    %208 = vmatpush1.msra.mxu0 %v23
    %209 = vmatprep.subr.mxu0 0.0
    %210 = vmatpush1.msra.mxu0 %v22
    %211 = vmatprep.subr.mxu0 0.0
    %212 = vmatpush1.msra.mxu0 %v21
    %213 = vmatprep.subr.mxu0 0.0
    %214 = vmatpush1.msra.mxu0 %v20
    %215 = vmatprep.subr.mxu0 0.0
    %216 = vmatpush1.msra.mxu0 %v19
    %217 = vmatprep.subr.mxu0 0.0
    %218 = vmatpush1.msra.mxu0 %v18
    %219 = vmatprep.subr.mxu0 0.0
    %220 = vmatpush1.msra.mxu0 %v17
    %221 = vmatprep.subr.mxu0 0.0
    %222 = vmatpush2.msra.mxu0 %v48
    %223 = vmatprep.subr.mxu0 0.0
    %224 = vmatpush2.msra.mxu0 %v47
    %225 = vmatprep.subr.mxu0 0.0
    %226 = vmatpush2.msra.mxu0 %v46
    %227 = vmatprep.subr.mxu0 0.0
    %228 = vmatpush2.msra.mxu0 %v45
    %229 = vmatprep.subr.mxu0 0.0
    %230 = vmatpush2.msra.mxu0 %v44
    %231 = vmatprep.subr.mxu0 0.0
    %232 = vmatpush2.msra.mxu0 %v43
    %233 = vmatprep.subr.mxu0 0.0
    %234 = vmatpush2.msra.mxu0 %v42
    %235 = vmatprep.subr.mxu0 0.0
    %236 = vmatpush2.msra.mxu0 %v41
    %237 = vmatprep.subr.mxu0 0.0
    %238 = vmatpush2.msra.mxu0 %v40
    %239 = vmatprep.subr.mxu0 0.0
    %240 = vmatpush2.msra.mxu0 %v39
    %241 = vmatprep.subr.mxu0 0.0
    %242 = vmatpush2.msra.mxu0 %v38
    %243 = vmatprep.subr.mxu0 0.0
    %244 = vmatpush2.msra.mxu0 %v37
    %245 = vmatprep.subr.mxu0 0.0
    %246 = vmatpush2.msra.mxu0 %v36
    %247 = vmatprep.subr.mxu0 0.0
    %248 = vmatpush2.msra.mxu0 %v35
    %249 = vmatprep.subr.mxu0 0.0
    %250 = vmatpush2.msra.mxu0 %v34
    %251 = vmatprep.subr.mxu0 0.0
    %252 = vmatpush2.msra.mxu0 %v33
    %253 = vmatprep.mubr.f32.mxu0 %v162
    %254 = vmatmul.mubr.f32.gmra.mxu0 %v154
    %v255 = vpop.f32.mrf.mxu0
    %v256 = vadd.f32 0.0, %v255
    %v257 = vpop.f32.mrf.mxu0
    %258 = vdwg.mxu0
    %259 = vmatprep.subr.mxu0 0.0
    %260 = vmatpush1.msra.mxu0 %v64
    %261 = vmatprep.subr.mxu0 0.0
    %262 = vmatpush1.msra.mxu0 %v63
    %263 = vmatprep.subr.mxu0 0.0
    %264 = vmatpush1.msra.mxu0 %v62
    %265 = vmatprep.subr.mxu0 0.0
    %266 = vmatpush1.msra.mxu0 %v61
    %267 = vmatprep.subr.mxu0 0.0
    %268 = vmatpush1.msra.mxu0 %v60
    %269 = vmatprep.subr.mxu0 0.0
    %270 = vmatpush1.msra.mxu0 %v59
    %271 = vmatprep.subr.mxu0 0.0
    %272 = vmatpush1.msra.mxu0 %v58
    %273 = vmatprep.subr.mxu0 0.0
    %274 = vmatpush1.msra.mxu0 %v57
    %275 = vmatprep.subr.mxu0 0.0
    %276 = vmatpush1.msra.mxu0 %v56
    %277 = vmatprep.subr.mxu0 0.0
    %278 = vmatpush1.msra.mxu0 %v55
    %279 = vmatprep.subr.mxu0 0.0
    %280 = vmatpush1.msra.mxu0 %v54
    %281 = vmatprep.subr.mxu0 0.0
    %282 = vmatpush1.msra.mxu0 %v53
    %283 = vmatprep.subr.mxu0 0.0
    %284 = vmatpush1.msra.mxu0 %v52
    %285 = vmatprep.subr.mxu0 0.0
    %286 = vmatpush1.msra.mxu0 %v51
    %287 = vmatprep.subr.mxu0 0.0
    %288 = vmatpush1.msra.mxu0 %v50
    %289 = vmatprep.subr.mxu0 0.0
    %290 = vmatpush1.msra.mxu0 %v49
    %291 = vmatprep.subr.mxu0 0.0
    %292 = vmatpush2.msra.mxu0 %v80
    %293 = vmatprep.subr.mxu0 0.0
    %294 = vmatpush2.msra.mxu0 %v79
    %295 = vmatprep.subr.mxu0 0.0
    %296 = vmatpush2.msra.mxu0 %v78
    %297 = vmatprep.subr.mxu0 0.0
    %298 = vmatpush2.msra.mxu0 %v77
    %299 = vmatprep.subr.mxu0 0.0
    %300 = vmatpush2.msra.mxu0 %v76
    %301 = vmatprep.subr.mxu0 0.0
    %302 = vmatpush2.msra.mxu0 %v75
    %303 = vmatprep.subr.mxu0 0.0
    %304 = vmatpush2.msra.mxu0 %v74
    %305 = vmatprep.subr.mxu0 0.0
    %306 = vmatpush2.msra.mxu0 %v73
    %307 = vmatprep.subr.mxu0 0.0
    %308 = vmatpush2.msra.mxu0 %v72
    %309 = vmatprep.subr.mxu0 0.0
    %310 = vmatpush2.msra.mxu0 %v71
    %311 = vmatprep.subr.mxu0 0.0
    %312 = vmatpush2.msra.mxu0 %v70
    %313 = vmatprep.subr.mxu0 0.0
    %314 = vmatpush2.msra.mxu0 %v69
    %315 = vmatprep.subr.mxu0 0.0
    %316 = vmatpush2.msra.mxu0 %v68
    %317 = vmatprep.subr.mxu0 0.0
    %318 = vmatpush2.msra.mxu0 %v67
    %319 = vmatprep.subr.mxu0 0.0
    %320 = vmatpush2.msra.mxu0 %v66
    %321 = vmatprep.subr.mxu0 0.0
    %322 = vmatpush2.msra.mxu0 %v65
    %323 = vmatprep.mubr.f32.mxu0 %v163
    %324 = vmatmul.mubr.f32.gmra.mxu0 %v161
    %v325 = vpop.f32.mrf.mxu0
    %v326 = vadd.f32 %v256, %v325
    %v327 = vpop.f32.mrf.mxu0
    %328 = vdwg.mxu0
    %329 = vmatprep.subr.mxu0 0.0
    %330 = vmatpush1.msra.mxu0 %v96
    %331 = vmatprep.subr.mxu0 0.0
    %332 = vmatpush1.msra.mxu0 %v95
    %333 = vmatprep.subr.mxu0 0.0
    %334 = vmatpush1.msra.mxu0 %v94
    %335 = vmatprep.subr.mxu0 0.0
    %336 = vmatpush1.msra.mxu0 %v93
    %337 = vmatprep.subr.mxu0 0.0
    %338 = vmatpush1.msra.mxu0 %v92
    %339 = vmatprep.subr.mxu0 0.0
    %340 = vmatpush1.msra.mxu0 %v91
    %341 = vmatprep.subr.mxu0 0.0
    %342 = vmatpush1.msra.mxu0 %v90
    %343 = vmatprep.subr.mxu0 0.0
    %344 = vmatpush1.msra.mxu0 %v89
    %345 = vmatprep.subr.mxu0 0.0
    %346 = vmatpush1.msra.mxu0 %v88
    %347 = vmatprep.subr.mxu0 0.0
    %348 = vmatpush1.msra.mxu0 %v87
    %349 = vmatprep.subr.mxu0 0.0
    %350 = vmatpush1.msra.mxu0 %v86
    %351 = vmatprep.subr.mxu0 0.0
    %352 = vmatpush1.msra.mxu0 %v85
    %353 = vmatprep.subr.mxu0 0.0
    %354 = vmatpush1.msra.mxu0 %v84
    %355 = vmatprep.subr.mxu0 0.0
    %356 = vmatpush1.msra.mxu0 %v83
    %357 = vmatprep.subr.mxu0 0.0
    %358 = vmatpush1.msra.mxu0 %v82
    %359 = vmatprep.subr.mxu0 0.0
    %360 = vmatpush1.msra.mxu0 %v81
    %361 = vmatprep.subr.mxu0 0.0
    %362 = vmatpush2.msra.mxu0 %v112
    %363 = vmatprep.subr.mxu0 0.0
    %364 = vmatpush2.msra.mxu0 %v111
    %365 = vmatprep.subr.mxu0 0.0
    %366 = vmatpush2.msra.mxu0 %v110
    %367 = vmatprep.subr.mxu0 0.0
    %368 = vmatpush2.msra.mxu0 %v109
    %369 = vmatprep.subr.mxu0 0.0
    %370 = vmatpush2.msra.mxu0 %v108
    %371 = vmatprep.subr.mxu0 0.0
    %372 = vmatpush2.msra.mxu0 %v107
    %373 = vmatprep.subr.mxu0 0.0
    %374 = vmatpush2.msra.mxu0 %v106
    %375 = vmatprep.subr.mxu0 0.0
    %376 = vmatpush2.msra.mxu0 %v105
    %377 = vmatprep.subr.mxu0 0.0
    %378 = vmatpush2.msra.mxu0 %v104
    %379 = vmatprep.subr.mxu0 0.0
    %380 = vmatpush2.msra.mxu0 %v103
    %381 = vmatprep.subr.mxu0 0.0
    %382 = vmatpush2.msra.mxu0 %v102
    %383 = vmatprep.subr.mxu0 0.0
    %384 = vmatpush2.msra.mxu0 %v101
    %385 = vmatprep.subr.mxu0 0.0
    %386 = vmatpush2.msra.mxu0 %v100
    %387 = vmatprep.subr.mxu0 0.0
    %388 = vmatpush2.msra.mxu0 %v99
    %389 = vmatprep.subr.mxu0 0.0
    %390 = vmatpush2.msra.mxu0 %v98
    %391 = vmatprep.subr.mxu0 0.0
    %392 = vmatpush2.msra.mxu0 %v97
    %393 = vmatprep.mubr.f32.mxu0 %v179
    %394 = vmatmul.mubr.f32.gmra.mxu0 %v171
    %v395 = vpop.f32.mrf.mxu0
    %v396 = vadd.f32 %v326, %v395
    %v397 = vpop.f32.mrf.mxu0
    %398 = vdwg.mxu0
    %399 = vmatprep.subr.mxu0 0.0
    %400 = vmatpush1.msra.mxu0 %v128
    %401 = vmatprep.subr.mxu0 0.0
    %402 = vmatpush1.msra.mxu0 %v127
    %403 = vmatprep.subr.mxu0 0.0
    %404 = vmatpush1.msra.mxu0 %v126
    %405 = vmatprep.subr.mxu0 0.0
    %406 = vmatpush1.msra.mxu0 %v125
    %407 = vmatprep.subr.mxu0 0.0
    %408 = vmatpush1.msra.mxu0 %v124
    %409 = vmatprep.subr.mxu0 0.0
    %410 = vmatpush1.msra.mxu0 %v123
    %411 = vmatprep.subr.mxu0 0.0
    %412 = vmatpush1.msra.mxu0 %v122
    %413 = vmatprep.subr.mxu0 0.0
    %414 = vmatpush1.msra.mxu0 %v121
    %415 = vmatprep.subr.mxu0 0.0
    %416 = vmatpush1.msra.mxu0 %v120
    %417 = vmatprep.subr.mxu0 0.0
    %418 = vmatpush1.msra.mxu0 %v119
    %419 = vmatprep.subr.mxu0 0.0
    %420 = vmatpush1.msra.mxu0 %v118
    %421 = vmatprep.subr.mxu0 0.0
    %422 = vmatpush1.msra.mxu0 %v117
    %423 = vmatprep.subr.mxu0 0.0
    %424 = vmatpush1.msra.mxu0 %v116
    %425 = vmatprep.subr.mxu0 0.0
    %426 = vmatpush1.msra.mxu0 %v115
    %427 = vmatprep.subr.mxu0 0.0
    %428 = vmatpush1.msra.mxu0 %v114
    %429 = vmatprep.subr.mxu0 0.0
    %430 = vmatpush1.msra.mxu0 %v113
    %431 = vmatprep.subr.mxu0 0.0
    %432 = vmatpush2.msra.mxu0 %v144
    %433 = vmatprep.subr.mxu0 0.0
    %434 = vmatpush2.msra.mxu0 %v143
    %435 = vmatprep.subr.mxu0 0.0
    %436 = vmatpush2.msra.mxu0 %v142
    %437 = vmatprep.subr.mxu0 0.0
    %438 = vmatpush2.msra.mxu0 %v141
    %439 = vmatprep.subr.mxu0 0.0
    %440 = vmatpush2.msra.mxu0 %v140
    %441 = vmatprep.subr.mxu0 0.0
    %442 = vmatpush2.msra.mxu0 %v139
    %443 = vmatprep.subr.mxu0 0.0
    %444 = vmatpush2.msra.mxu0 %v138
    %445 = vmatprep.subr.mxu0 0.0
    %446 = vmatpush2.msra.mxu0 %v137
    %447 = vmatprep.subr.mxu0 0.0
    %448 = vmatpush2.msra.mxu0 %v136
    %449 = vmatprep.subr.mxu0 0.0
    %450 = vmatpush2.msra.mxu0 %v135
    %451 = vmatprep.subr.mxu0 0.0
    %452 = vmatpush2.msra.mxu0 %v134
    %453 = vmatprep.subr.mxu0 0.0
    %454 = vmatpush2.msra.mxu0 %v133
    %455 = vmatprep.subr.mxu0 0.0
    %456 = vmatpush2.msra.mxu0 %v132
    %457 = vmatprep.subr.mxu0 0.0
    %458 = vmatpush2.msra.mxu0 %v131
    %459 = vmatprep.subr.mxu0 0.0
    %460 = vmatpush2.msra.mxu0 %v130
    %461 = vmatprep.subr.mxu0 0.0
    %462 = vmatpush2.msra.mxu0 %v129
    %463 = vmatprep.mubr.f32.mxu0 %v180
    %464 = vmatmul.mubr.f32.gmra.mxu0 %v178
    %v465 = vpop.f32.mrf.mxu0
    %v466 = vadd.f32 %v396, %v465
    %v467 = vpop.f32.mrf.mxu0
    %468 = vdwg.mxu0
    %v469 = vxor.u32 %v466, 2147483648
    %v470 = vmul.f32 %v469, 1.442695
    %v471 = vpow.pop %v470
    %v472 = vadd.f32 %v471, 1.0
    %v473 = vrcp.pop %v472
    %v474 = vmul.f32 1.0, %v473
    %v475 = vmul.f32 %v466, %v474
    %v476 = vld [vmem:[%s2] sm:$0xff]
    %vm477 = vcmask 64512
    %v479 = vsel %vm477, %v475, 0
    %481 = vmatprep.subr.mxu0 0.0
    %482 = vmatpush1.msra.mxu0 0.0
    %483 = vmatprep.subr.mxu0 0.0
    %484 = vmatpush1.msra.mxu0 0.0
    %485 = vmatprep.subr.mxu0 0.0
    %486 = vmatpush1.msra.mxu0 0.0
    %487 = vmatprep.subr.mxu0 0.0
    %488 = vmatpush1.msra.mxu0 0.0
    %489 = vmatprep.subr.mxu0 0.0
    %490 = vmatpush1.msra.mxu0 0.0
    %491 = vmatprep.subr.mxu0 0.0
    %492 = vmatpush1.msra.mxu0 0.0
    %493 = vmatprep.subr.mxu0 0.0
    %494 = vmatpush1.msra.mxu0 0.0
    %495 = vmatprep.subr.mxu0 0.0
    %496 = vmatpush1.msra.mxu0 0.0
    %497 = vmatprep.subr.mxu0 0.0
    %498 = vmatpush1.msra.mxu0 0.0
    %499 = vmatprep.subr.mxu0 0.0
    %500 = vmatpush1.msra.mxu0 0.0
    %501 = vmatprep.subr.mxu0 0.0
    %502 = vmatpush1.msra.mxu0 0.0
    %503 = vmatprep.subr.mxu0 0.0
    %504 = vmatpush1.msra.mxu0 0.0
    %505 = vmatprep.subr.mxu0 0.0
    %506 = vmatpush1.msra.mxu0 0.0
    %507 = vmatprep.subr.mxu0 0.0
    %508 = vmatpush1.msra.mxu0 0.0
    %509 = vmatprep.subr.mxu0 0.0
    %510 = vmatpush1.msra.mxu0 0.0
    %511 = vmatprep.subr.mxu0 0.0
    %512 = vmatpush1.msra.mxu0 %v476
    %513 = vmatprep.subr.mxu0 0.0
    %514 = vmatpush2.msra.mxu0 0.0
    %515 = vmatprep.subr.mxu0 0.0
    %516 = vmatpush2.msra.mxu0 0.0
    %517 = vmatprep.subr.mxu0 0.0
    %518 = vmatpush2.msra.mxu0 0.0
    %519 = vmatprep.subr.mxu0 0.0
    %520 = vmatpush2.msra.mxu0 0.0
    %521 = vmatprep.subr.mxu0 0.0
    %522 = vmatpush2.msra.mxu0 0.0
    %523 = vmatprep.subr.mxu0 0.0
    %524 = vmatpush2.msra.mxu0 0.0
    %525 = vmatprep.subr.mxu0 0.0
    %526 = vmatpush2.msra.mxu0 0.0
    %527 = vmatprep.subr.mxu0 0.0
    %528 = vmatpush2.msra.mxu0 0.0
    %529 = vmatprep.subr.mxu0 0.0
    %530 = vmatpush2.msra.mxu0 0.0
    %531 = vmatprep.subr.mxu0 0.0
    %532 = vmatpush2.msra.mxu0 0.0
    %533 = vmatprep.subr.mxu0 0.0
    %534 = vmatpush2.msra.mxu0 0.0
    %535 = vmatprep.subr.mxu0 0.0
    %536 = vmatpush2.msra.mxu0 0.0
    %537 = vmatprep.subr.mxu0 0.0
    %538 = vmatpush2.msra.mxu0 0.0
    %539 = vmatprep.subr.mxu0 0.0
    %540 = vmatpush2.msra.mxu0 0.0
    %541 = vmatprep.subr.mxu0 0.0
    %542 = vmatpush2.msra.mxu0 0.0
    %543 = vmatprep.subr.mxu0 0.0
    %544 = vmatpush2.msra.mxu0 0.0
    %545 = vmatprep.mubr.f32.mxu0 0.0
    %546 = vmatmul.mubr.f32.gmra.mxu0 %v479
    %v547 = vpop.f32.mrf.mxu0
    %v548 = vadd.f32 0.0, %v547
    %v549 = vpop.f32.mrf.mxu0
    %550 = vdwg.mxu0
    %v551 = vxor.u32 %v548, 2147483648
    %v552 = vmul.f32 %v551, 1.442695
    %v553 = vpow.pop %v552
    %v554 = vadd.f32 %v553, 1.0
    %v555 = vrcp.pop %v554
    %v556 = vmul.f32 1.0, %v555
    %vm557 = vcmask 58368
    %558 = vst.msk [vmem:[#allocation2] sm:$0x3] %vm557, %v556
    // Predicated region
    $region14: #{tpu_custom_call.1} parent=1 // pred_check
      _
    $region15: #{tpu_custom_call.1} parent=1 // pred_check_branch
      %560 = sbr.rel (0) target = $region17
    $region16: #{tpu_custom_call.1} parent=1 // pred_region
      %s562 = ssub.s32 32, 32
      %563 = vsyncadd [#allocation3], %s562
      %s565 = sshll.u32 [#allocation2], 4
      %s566 = int_to_ptr.vmem [resolvable:$true] %s565
      %568 = dma.vmem_to_hbm [thread:$0]  %s566, 32, %s3, [#allocation3]
    $region17: #{tpu_custom_call.1} parent=1 // pred_fallthru
      _
    // Predicated region
    $region18: #{tpu_custom_call.1} parent=1 // pred_check
      _
    $region19: #{tpu_custom_call.1} parent=1 // pred_check_branch
      %570 = sbr.rel (0) target = $region21
    $region20: #{tpu_custom_call.1} parent=1 // pred_region
      %571 = dma.done [#allocation3], 32
    $region21: #{tpu_custom_call.1} parent=1 // pred_fallthru
      _
    %572 = vsyncpa [#allocation3], 1

</llo_original>
